<compile_context>
chip_gen: v7x
topology: tpu7x:2x2x1
jax: 0.10.0
libtpu: 0.0.40
codegen_flags: <defaults>
</compile_context>

<pallas_src>
import functools

import jax
import jax.numpy as jnp
from jax.experimental import pallas as pl
from jax.experimental.pallas import tpu as pltpu


def linear_probe_kernel(x_ref, w_ref, b_ref, o_ref):
    # f32 x-tile -> bf16 in-register (cheap VPU cast, hidden under the DMA),
    # MXU matmul against the resident bf16 weight with f32 accumulation,
    # f32 bias add, lane-dense f32 store.
    x_bf = x_ref[...].astype(jnp.bfloat16)
    acc = jnp.dot(x_bf, w_ref[...], preferred_element_type=jnp.float32)
    o_ref[...] = (acc + b_ref[...]).astype(o_ref.dtype)


@functools.partial(jax.jit, static_argnames=("tm",))
def linear_probe(x, w_t, b, *, tm=None):
    """LinearProbe forward.

    x:   [M, K] float32 activations
    w_t: [K, N] float32 (PyTorch weight W[N, K], pre-transposed)
    b:   [N]    float32 bias
    returns [M, N] float32
    """
    M, K = x.shape
    K2, N = w_t.shape
    assert K == K2, (K, K2)

    # Lane-dense output: pad the class dim to a multiple of 128.
    n_pad = max(128, pl.cdiv(N, 128) * 128)

    # Weight is tiny and read once -> pre-cast to bf16 + zero-pad (one-time,
    # negligible).  x stays f32 in HBM; it is cast inside the kernel.
    w_c = w_t.astype(jnp.bfloat16)
    if n_pad != N:
        w_c = jnp.pad(w_c, ((0, 0), (0, n_pad - N)))
        b_p = jnp.pad(b, (0, n_pad - N))
    else:
        b_p = b
    b2 = b_p.reshape(1, n_pad).astype(jnp.float32)

    # Batch tile: whole batch when small (grid of 1), otherwise 512-row tiles
    # (multiple of 8) so per-step overhead amortizes and the HBM stream stays
    # at roofline; >= 2 steps lets v7x shard them across its 2 TensorCores.
    if tm is None:
        tm = M if M <= 512 else 512
    grid = (pl.cdiv(M, tm),)

    # VMEM footprint: double-buffered f32 x tile + resident bf16 weight +
    # resident f32 bias + double-buffered f32 output tile.
    vmem_est = (2 * tm * K * 4          # x, double-buffered (f32)
                + K * n_pad * 2         # resident weight (bf16)
                + n_pad * 4             # resident bias (f32)
                + 2 * tm * n_pad * 4)   # output, double-buffered (f32)
    vmem_limit = None
    if vmem_est > 16 * 1024 * 1024:
        vmem_limit = int(min(vmem_est * 3 // 2, 64 * 1024 * 1024))

    cost = pl.CostEstimate(
        flops=2 * M * K * n_pad,
        transcendentals=0,
        bytes_accessed=(M * K * 4          # x stream (f32)
                        + K * n_pad * 2    # weight, read once (bf16)
                        + n_pad * 4        # bias
                        + M * n_pad * 4),  # f32 output
    )

    out = pl.pallas_call(
        linear_probe_kernel,
        out_shape=jax.ShapeDtypeStruct((M, n_pad), jnp.float32),
        grid_spec=pltpu.PrefetchScalarGridSpec(
            num_scalar_prefetch=0,
            grid=grid,
            in_specs=[
                pl.BlockSpec((tm, K), lambda i: (i, 0)),      # x tile over batch
                pl.BlockSpec((K, n_pad), lambda i: (0, 0)),   # weight, resident
                pl.BlockSpec((1, n_pad), lambda i: (0, 0)),   # bias, resident
            ],
            out_specs=pl.BlockSpec((tm, n_pad), lambda i: (i, 0)),
        ),
        compiler_params=pltpu.CompilerParams(
            dimension_semantics=("parallel",),
            vmem_limit_bytes=vmem_limit,
        ),
        cost_estimate=cost,
    )(x, w_c, b2)

    # Drop the zero-padded classes.
    return out[:, :N]


if __name__ == "__main__":
    # Small shapes consistent with LinearProbe(input_dim, num_classes).
    batch, input_dim, num_classes = 16, 256, 8

    key = jax.random.PRNGKey(0)
    kx, kw, kb = jax.random.split(key, 3)

    x = jax.random.normal(kx, (batch, input_dim), dtype=jnp.float32)
    # PyTorch Linear stores W as [out, in]; the kernel takes W^T = [in, out].
    w = jax.random.normal(kw, (num_classes, input_dim), dtype=jnp.float32) * 0.02
    b = jax.random.normal(kb, (num_classes,), dtype=jnp.float32) * 0.01
    w_t = w.T

    out = jax.block_until_ready(linear_probe(x, w_t, b))

    # Reference (same math as nn.Linear, f32).  Tolerance covers the bf16
    # rounding of x/W on the MXU; accumulation + bias are f32 in the kernel.
    ref = x @ w_t + b
    assert out.shape == (batch, num_classes)
    assert out.dtype == jnp.float32
    assert jnp.allclose(out, ref, atol=2e-2, rtol=2e-2), float(
        jnp.max(jnp.abs(out - ref)))

    print("KERNEL_OK")
</pallas_src>

<mosaic_0001>
module attributes {stable_mosaic.version = 11 : i64} {
  func.func @linear_probe_kernel(%arg0: i32, %arg1: memref<16x256xf32, #tpu.memory_space<vmem>>, %arg2: memref<256x128xbf16, #tpu.memory_space<vmem>>, %arg3: memref<1x128xf32, #tpu.memory_space<vmem>>, %arg4: memref<16x128xf32, #tpu.memory_space<vmem>>) attributes {dimension_semantics = [#tpu.dimension_semantics<parallel>], iteration_bounds = array<i64: 1>, scalar_prefetch = 0 : i64, scratch_operands = 0 : i64, tpu.core_type = #tpu.core_type<tc>, window_params = [{transform_indices = @transform_0, window_bounds = array<i64: 16, 256>}, {pipeline_mode = #tpu.pipeline_mode<synchronous>, transform_indices = @transform_1, window_bounds = array<i64: 256, 128>}, {pipeline_mode = #tpu.pipeline_mode<synchronous>, transform_indices = @transform_2, window_bounds = array<i64: 1, 128>}, {transform_indices = @transform_3, window_bounds = array<i64: 16, 128>}]} {
    %c0 = arith.constant 0 : index
    %c0_0 = arith.constant 0 : index
    %0 = vector.load %arg1[%c0, %c0_0] : memref<16x256xf32, #tpu.memory_space<vmem>>, vector<16x256xf32>
    %1 = arith.truncf %0 : vector<16x256xf32> to vector<16x256xbf16>
    %c0_1 = arith.constant 0 : index
    %c0_2 = arith.constant 0 : index
    %2 = vector.load %arg2[%c0_1, %c0_2] : memref<256x128xbf16, #tpu.memory_space<vmem>>, vector<256x128xbf16>
    %cst = arith.constant dense<0.000000e+00> : vector<16x128xf32>
    %3 = tpu.matmul %1, %2, %cst {dimension_numbers = #tpu.dot_dimension_numbers<[1], [0], [0], [1], [0, 0, 1, 1], [], []>} : vector<16x256xbf16>, vector<256x128xbf16>, vector<16x128xf32> -> vector<16x128xf32>
    %c0_3 = arith.constant 0 : index
    %c0_4 = arith.constant 0 : index
    %4 = vector.load %arg3[%c0_3, %c0_4] : memref<1x128xf32, #tpu.memory_space<vmem>>, vector<1x128xf32>
    %5 = vector.broadcast %4 : vector<1x128xf32> to vector<16x128xf32>
    %6 = arith.addf %3, %5 : vector<16x128xf32>
    %c0_5 = arith.constant 0 : index
    %c0_6 = arith.constant 0 : index
    %7 = vector.load %arg4[%c0_5, %c0_6] : memref<16x128xf32, #tpu.memory_space<vmem>>, vector<16x128xf32>
    tpu.vector_store %arg4[%c0_5, %c0_6], %6 {strides = array<i32>} : memref<16x128xf32, #tpu.memory_space<vmem>>, vector<16x128xf32>,
    return
  }
  func.func @transform_0(%arg0: i32) -> (i32, i32) {
    %c0_i32 = arith.constant 0 : i32
    %c0_i32_0 = arith.constant 0 : i32
    return %arg0, %c0_i32 : i32, i32
  }
  func.func @transform_1(%arg0: i32) -> (i32, i32) {
    %c0_i32 = arith.constant 0 : i32
    %c0_i32_0 = arith.constant 0 : i32
    %c0_i32_1 = arith.constant 0 : i32
    return %c0_i32, %c0_i32_0 : i32, i32
  }
  func.func @transform_2(%arg0: i32) -> (i32, i32) {
    %c0_i32 = arith.constant 0 : i32
    %c0_i32_0 = arith.constant 0 : i32
    %c0_i32_1 = arith.constant 0 : i32
    return %c0_i32, %c0_i32_0 : i32, i32
  }
  func.func @transform_3(%arg0: i32) -> (i32, i32) {
    %c0_i32 = arith.constant 0 : i32
    %c0_i32_0 = arith.constant 0 : i32
    return %arg0, %c0_i32 : i32, i32
  }
}

</mosaic_0001>

<llo_original>
// kernel: linear_probe.1
$region0: #{linear_probe.1}
  #allocation0 [shape = 'u32[]', space=smem, size = 0x4, offset = 0x4, fixed_abs, tag = 'smem constant byte address 0x4 - core index']
  #allocation1 [shape = 'u32[144,128]{1,0:T(1,128)}', space=vmem, size = 0x12000, scoped, tag = 'internal scratch']
  %s0 = inlined_call_operand.vmem [shape: f32[16,256], index: 0, kind: input, shape index: {}]
  %s1 = inlined_call_operand.vmem [shape: bf16[256,128], index: 1, kind: input, shape index: {}]
  %s2 = inlined_call_operand.vmem [shape: f32[1,128], index: 2, kind: input, shape index: {}]
  %s3 = inlined_call_operand.vmem [shape: f32[16,128], index: 3, kind: output, shape index: {}]
  %s4 = sld [smem:[#allocation0]]
  $region22: #{linear_probe.1} parent=0
    _
  %s6 = ssub.s32 1, %s4
  %s7 = scalar_select 0, %s6, %s4
  // Predicated region
  $region2: #{linear_probe.1} parent=0 // pred_check
    _
  $region3: #{linear_probe.1} parent=0 // pred_check_branch
    %9 = sbr.rel (0) target = $region5
  $region4: #{linear_probe.1} parent=0 // pred_region
    _
  $region5: #{linear_probe.1} parent=0 // pred_fallthru
    _
  // Predicated region
  $region6: #{linear_probe.1} parent=0 // pred_check
    _
  $region7: #{linear_probe.1} parent=0 // pred_check_branch
    %11 = sbr.rel (0) target = $region9
  $region8: #{linear_probe.1} parent=0 // pred_region
    _
  $region9: #{linear_probe.1} parent=0 // pred_fallthru
    _
  // Predicated region
  $region10: #{linear_probe.1} parent=0 // pred_check
    _
  $region11: #{linear_probe.1} parent=0 // pred_check_branch
    %13 = sbr.rel (0) target = $region13
  $region12: #{linear_probe.1} parent=0 // pred_region
    _
  $region13: #{linear_probe.1} parent=0 // pred_fallthru
    _
  %v15 = vld [vmem:[%s0] sm:$0xff]
  %v16 = vld [vmem:[%s0 + $0x8] sm:$0xff]
  %v17 = vld [vmem:[%s0 + $0x10] sm:$0xff]
  %v18 = vld [vmem:[%s0 + $0x18] sm:$0xff]
  %v19 = vpack.c.bf16 %v17, %v15
  %v20 = vpack.c.bf16 %v18, %v16
  %v21 = vld [vmem:[%s1] sm:$0xf]
  %v22 = vld [vmem:[%s1 + $0x4] sm:$0xf]
  %v23 = vld [vmem:[%s1 + $0x8] sm:$0xf]
  %v24 = vld [vmem:[%s1 + $0xc] sm:$0xf]
  %v25 = vld [vmem:[%s1 + $0x10] sm:$0xf]
  %v26 = vld [vmem:[%s1 + $0x14] sm:$0xf]
  %v27 = vld [vmem:[%s1 + $0x18] sm:$0xf]
  %v28 = vld [vmem:[%s1 + $0x1c] sm:$0xf]
  %v29 = vld [vmem:[%s1 + $0x20] sm:$0xf]
  %v30 = vld [vmem:[%s1 + $0x24] sm:$0xf]
  %v31 = vld [vmem:[%s1 + $0x28] sm:$0xf]
  %v32 = vld [vmem:[%s1 + $0x2c] sm:$0xf]
  %v33 = vld [vmem:[%s1 + $0x30] sm:$0xf]
  %v34 = vld [vmem:[%s1 + $0x34] sm:$0xf]
  %v35 = vld [vmem:[%s1 + $0x38] sm:$0xf]
  %v36 = vld [vmem:[%s1 + $0x3c] sm:$0xf]
  %v37 = vld [vmem:[%s1 + $0x40] sm:$0xf]
  %v38 = vld [vmem:[%s1 + $0x44] sm:$0xf]
  %v39 = vld [vmem:[%s1 + $0x48] sm:$0xf]
  %v40 = vld [vmem:[%s1 + $0x4c] sm:$0xf]
  %v41 = vld [vmem:[%s1 + $0x50] sm:$0xf]
  %v42 = vld [vmem:[%s1 + $0x54] sm:$0xf]
  %v43 = vld [vmem:[%s1 + $0x58] sm:$0xf]
  %v44 = vld [vmem:[%s1 + $0x5c] sm:$0xf]
  %v45 = vld [vmem:[%s1 + $0x60] sm:$0xf]
  %v46 = vld [vmem:[%s1 + $0x64] sm:$0xf]
  %v47 = vld [vmem:[%s1 + $0x68] sm:$0xf]
  %v48 = vld [vmem:[%s1 + $0x6c] sm:$0xf]
  %v49 = vld [vmem:[%s1 + $0x70] sm:$0xf]
  %v50 = vld [vmem:[%s1 + $0x74] sm:$0xf]
  %v51 = vld [vmem:[%s1 + $0x78] sm:$0xf]
  %v52 = vld [vmem:[%s1 + $0x7c] sm:$0xf]
  %v53 = vld [vmem:[%s2] sm:$0x1]
  %v55 = vlaneseq
  %v56 = vshrl.u32 %v55, 7
  %v57 = vsub.s32 0, %v56
  %v58 = vrot.slane %v53, %v57
  %v92 = vunpack.c.l.b16 %v21
  %v93 = vunpack.c.l.b16 %v22
  %v94 = vunpack.c.l.b16 %v23
  %v95 = vunpack.c.l.b16 %v24
  %v96 = vunpack.c.l.b16 %v25
  %v97 = vunpack.c.l.b16 %v26
  %v98 = vunpack.c.l.b16 %v27
  %v99 = vunpack.c.l.b16 %v28
  %v100 = vunpack.c.l.b16 %v29
  %v101 = vunpack.c.l.b16 %v30
  %v102 = vunpack.c.l.b16 %v31
  %v103 = vunpack.c.l.b16 %v32
  %v104 = vunpack.c.l.b16 %v33
  %v105 = vunpack.c.l.b16 %v34
  %v106 = vunpack.c.l.b16 %v35
  %v107 = vunpack.c.l.b16 %v36
  %v108 = vunpack.c.l.b16 %v37
  %v109 = vunpack.c.l.b16 %v38
  %v110 = vunpack.c.l.b16 %v39
  %v111 = vunpack.c.l.b16 %v40
  %v112 = vunpack.c.l.b16 %v41
  %v113 = vunpack.c.l.b16 %v42
  %v114 = vunpack.c.l.b16 %v43
  %v115 = vunpack.c.l.b16 %v44
  %v116 = vunpack.c.l.b16 %v45
  %v117 = vunpack.c.l.b16 %v46
  %v118 = vunpack.c.l.b16 %v47
  %v119 = vunpack.c.l.b16 %v48
  %v120 = vunpack.c.l.b16 %v49
  %v121 = vunpack.c.l.b16 %v50
  %v122 = vunpack.c.l.b16 %v51
  %v123 = vunpack.c.l.b16 %v52
  %v124 = vpack.c.b16 %v93, %v92
  %v125 = vpack.c.b16 %v95, %v94
  %v126 = vpack.c.b16 %v97, %v96
  %v127 = vpack.c.b16 %v99, %v98
  %v128 = vpack.c.b16 %v101, %v100
  %v129 = vpack.c.b16 %v103, %v102
  %v130 = vpack.c.b16 %v105, %v104
  %v131 = vpack.c.b16 %v107, %v106
  %v132 = vpack.c.b16 %v109, %v108
  %v133 = vpack.c.b16 %v111, %v110
  %v134 = vpack.c.b16 %v113, %v112
  %v135 = vpack.c.b16 %v115, %v114
  %v136 = vpack.c.b16 %v117, %v116
  %v137 = vpack.c.b16 %v119, %v118
  %v138 = vpack.c.b16 %v121, %v120
  %v139 = vpack.c.b16 %v123, %v122
  %156 = vmatprep.subr.bf16.mxu0 0
  %157 = vmatpush1.bf16.msra.mxu0 %v124
  %158 = vmatprep.subr.bf16.mxu0 0
  %159 = vmatpush1.bf16.msra.mxu0 %v125
  %160 = vmatprep.subr.bf16.mxu0 0
  %161 = vmatpush1.bf16.msra.mxu0 %v126
  %162 = vmatprep.subr.bf16.mxu0 0
  %163 = vmatpush1.bf16.msra.mxu0 %v127
  %164 = vmatprep.subr.bf16.mxu0 0
  %165 = vmatpush1.bf16.msra.mxu0 %v128
  %166 = vmatprep.subr.bf16.mxu0 0
  %167 = vmatpush1.bf16.msra.mxu0 %v129
  %168 = vmatprep.subr.bf16.mxu0 0
  %169 = vmatpush1.bf16.msra.mxu0 %v130
  %170 = vmatprep.subr.bf16.mxu0 0
  %171 = vmatpush1.bf16.msra.mxu0 %v131
  %172 = vmatprep.subr.bf16.mxu0 0
  %173 = vmatpush1.bf16.msra.mxu0 %v132
  %174 = vmatprep.subr.bf16.mxu0 0
  %175 = vmatpush1.bf16.msra.mxu0 %v133
  %176 = vmatprep.subr.bf16.mxu0 0
  %177 = vmatpush1.bf16.msra.mxu0 %v134
  %178 = vmatprep.subr.bf16.mxu0 0
  %179 = vmatpush1.bf16.msra.mxu0 %v135
  %180 = vmatprep.subr.bf16.mxu0 0
  %181 = vmatpush1.bf16.msra.mxu0 %v136
  %182 = vmatprep.subr.bf16.mxu0 0
  %183 = vmatpush1.bf16.msra.mxu0 %v137
  %184 = vmatprep.subr.bf16.mxu0 0
  %185 = vmatpush1.bf16.msra.mxu0 %v138
  %186 = vmatprep.subr.bf16.mxu0 0
  %187 = vmatpush1.bf16.msra.mxu0 %v139
  %188 = vmatprep.mubr.bf16.mxu0 %v20
  %189 = vmatmul.mubr.bf16.gmra.mrb[0].mxu0 %v19
  %v190 = vpop.f32.mrb[0].mxu0
  %v191 = vadd.f32 %v58, %v190
  %v192 = vpop.f32.mrb[0].mxu0
  %v193 = vpop.f32.mrb[0].mxu0
  %v194 = vadd.f32 %v58, %v193
  %v195 = vpop.f32.mrb[0].mxu0
  %196 = vdwg.mxu0
  %197 = vst [vmem:[%s3] sm:$0xff] %v191
  %198 = vst [vmem:[%s3 + $0x8] sm:$0xff] %v194
  // Predicated region
  $region14: #{linear_probe.1} parent=0 // pred_check
    _
  $region15: #{linear_probe.1} parent=0 // pred_check_branch
    %200 = sbr.rel (0) target = $region17
  $region16: #{linear_probe.1} parent=0 // pred_region
    _
  $region17: #{linear_probe.1} parent=0 // pred_fallthru
    _
  // Predicated region
  $region18: #{linear_probe.1} parent=0 // pred_check
    _
  $region19: #{linear_probe.1} parent=0 // pred_check_branch
    %202 = sbr.rel (0) target = $region21
  $region20: #{linear_probe.1} parent=0 // pred_region
    _
  $region21: #{linear_probe.1} parent=0 // pred_fallthru
    _

</llo_original>
